<compile_context>
chip_gen: v7x
topology: tpu7x:2x2x1
jax: 0.10.0
libtpu: 0.0.40
codegen_flags: <defaults>
</compile_context>

<pallas_src>
import functools

import jax
import jax.numpy as jnp
from jax import lax
from jax.experimental import pallas as pl
from jax.experimental.pallas import tpu as pltpu

LANE = 128
CHUNK_ROWS = 512            # inner fold granularity; acc block = (512, 128) fp32
DEFAULT_BLOCK_ROWS = 8192   # 4 MiB fp32 / 2 MiB bf16 per input tile


def _default_num_splits():
    """1 on single-TensorCore chips (v5e/v6e); core count on dual-TC chips."""
    try:
        d = jax.devices()[0]
        nc = getattr(d, "num_cores", None)
        if isinstance(nc, int) and nc >= 1:
            return nc
        kind = str(getattr(d, "device_kind", "")).lower()
        if "v7" in kind:
            return 2
    except Exception:
        pass
    return 1


def _charbonnier_kernel(x_ref, y_ref, o_ref, *, eps2, chunk_rows, n_chunks,
                        block_rows, blocks_per_split, num_blocks, rows_full,
                        tail_cols, need_edge_mask, has_dup):
    p = pl.program_id(0)
    k = pl.program_id(1)
    b = p * blocks_per_split + k          # logical block index

    @pl.when(k == 0)
    def _():
        o_ref[...] = jnp.zeros_like(o_ref)

    def chunk_val(i, masked):
        start = i * chunk_rows
        if not isinstance(start, int):
            start = pl.multiple_of(start, chunk_rows)
        x = x_ref[pl.ds(start, chunk_rows), :].astype(jnp.float32)
        y = y_ref[pl.ds(start, chunk_rows), :].astype(jnp.float32)
        d = x - y
        v = jnp.sqrt(d * d + jnp.float32(eps2))
        if masked:
            # Only the single partial last block pays for this.  Row/col
            # formulation avoids the int32-overflowing `row*128 + col` form.
            grow = (b * block_rows + start
                    + lax.broadcasted_iota(jnp.int32, (chunk_rows, LANE), 0))
            gcol = lax.broadcasted_iota(jnp.int32, (chunk_rows, LANE), 1)
            valid = (grow < rows_full) | ((grow == rows_full) & (gcol < tail_cols))
            v = jnp.where(valid, v, 0.0)
        return v

    def accumulate(masked):
        if n_chunks == 1:
            o_ref[0] += chunk_val(0, masked)
        else:
            def body(i, carry):
                o_ref[0] += chunk_val(i, masked)
                return carry
            lax.fori_loop(0, n_chunks, body, jnp.int32(0))

    if not need_edge_mask and not has_dup:
        # Common case: every block is full and real -> pure unmasked stream.
        accumulate(masked=False)
    else:
        is_real = b < num_blocks
        is_edge = b == num_blocks - 1
        if need_edge_mask:
            @pl.when(is_real & (b != num_blocks - 1))
            def _():
                accumulate(masked=False)

            @pl.when(is_edge)
            def _():
                accumulate(masked=True)
        else:
            # Only split-raggedness: duplicated (clamped) blocks skip work.
            @pl.when(is_real)
            def _():
                accumulate(masked=False)


def charbonnier_loss(x, y, eps=1e-6, block_rows=DEFAULT_BLOCK_ROWS,
                     num_splits=None):
    assert x.shape == y.shape
    total = int(x.size)
    assert total > 0

    xf = x.reshape(-1)
    yf = y.reshape(-1)

    rows = pl.cdiv(total, LANE)
    lane_pad = rows * LANE - total
    if lane_pad:
        # Tiny (<128 element) pad only when total is not a multiple of 128;
        # the padded elements are masked to zero in the edge-block branch.
        xf = jnp.pad(xf, (0, lane_pad))
        yf = jnp.pad(yf, (0, lane_pad))
    x2 = xf.reshape(rows, LANE)
    y2 = yf.reshape(rows, LANE)

    # Block / chunk sizing: big lane-dense tiles; the chunk is the inner fold
    # granularity (and the accumulator / output row count).
    if block_rows >= rows:
        block_rows = rows
        chunk_rows = rows
    else:
        block_rows = max(CHUNK_ROWS, (block_rows // CHUNK_ROWS) * CHUNK_ROWS)
        chunk_rows = CHUNK_ROWS
    n_chunks = block_rows // chunk_rows

    num_blocks = pl.cdiv(rows, block_rows)

    if num_splits is None:
        num_splits = _default_num_splits()
    splits = max(1, min(int(num_splits), num_blocks))
    blocks_per_split = pl.cdiv(num_blocks, splits)

    # Is the last real block partial (row tail and/or lane pad)?
    need_edge_mask = (num_blocks * block_rows * LANE) != total
    # Does the (splits x blocks_per_split) grid over-cover the real blocks?
    has_dup = splits * blocks_per_split > num_blocks

    def in_map(p, k):
        # Clamp so a ragged split never DMAs past the last real block; the
        # duplicated block skips accumulation inside the kernel (and its DMA
        # index is unchanged, so the fetch is elided).
        return (jnp.minimum(p * blocks_per_split + k, num_blocks - 1), 0)

    kernel = functools.partial(
        _charbonnier_kernel,
        eps2=float(eps) * float(eps),
        chunk_rows=chunk_rows,
        n_chunks=n_chunks,
        block_rows=block_rows,
        blocks_per_split=blocks_per_split,
        num_blocks=num_blocks,
        rows_full=total // LANE,
        tail_cols=total % LANE,
        need_edge_mask=need_edge_mask,
        has_dup=has_dup,
    )

    partial_sums = pl.pallas_call(
        kernel,
        out_shape=jax.ShapeDtypeStruct((splits, chunk_rows, LANE), jnp.float32),
        grid_spec=pltpu.PrefetchScalarGridSpec(
            num_scalar_prefetch=0,
            grid=(splits, blocks_per_split),
            in_specs=[
                pl.BlockSpec((block_rows, LANE), in_map),
                pl.BlockSpec((block_rows, LANE), in_map),
            ],
            out_specs=pl.BlockSpec((1, chunk_rows, LANE), lambda p, k: (p, 0, 0)),
        ),
        compiler_params=pltpu.CompilerParams(
            dimension_semantics=("parallel", "arbitrary"),
            vmem_limit_bytes=32 * 1024 * 1024,
        ),
    )(x2, y2)

    # Tiny final reduction (at most splits * 512 * 128 fp32 values) in XLA.
    return jnp.sum(partial_sums) / jnp.float32(total)


if __name__ == "__main__":
    key = jax.random.PRNGKey(0)
    kx, ky = jax.random.split(key)

    # Small NCHW shapes consistent with an image-restoration loss.
    x = jax.random.normal(kx, (2, 4, 16, 16), dtype=jnp.float32)
    y = jax.random.normal(ky, (2, 4, 16, 16), dtype=jnp.float32)

    eps = 1e-6
    loss = charbonnier_loss(x, y, eps=eps)
    loss = jax.block_until_ready(loss)

    # Pure-JAX reference check (same semantics as the PyTorch module).
    ref = jnp.mean(jnp.sqrt((x - y) ** 2 + eps ** 2))
    assert jnp.allclose(loss, ref, rtol=1e-5, atol=1e-6), (loss, ref)

    print("KERNEL_OK")
</pallas_src>

<mosaic_0001>
module attributes {stable_mosaic.version = 11 : i64} {
  func.func @_charbonnier_kernel(%arg0: i32, %arg1: i32, %arg2: memref<16x128xf32, #tpu.memory_space<vmem>>, %arg3: memref<16x128xf32, #tpu.memory_space<vmem>>, %arg4: memref<1x16x128xf32, #tpu.memory_space<vmem>>) attributes {dimension_semantics = [#tpu.dimension_semantics<parallel>, #tpu.dimension_semantics<arbitrary>], iteration_bounds = array<i64: 1, 1>, scalar_prefetch = 0 : i64, scratch_operands = 0 : i64, tpu.core_type = #tpu.core_type<tc>, window_params = [{transform_indices = @transform_0, window_bounds = array<i64: 16, 128>}, {transform_indices = @transform_1, window_bounds = array<i64: 16, 128>}, {transform_indices = @transform_2, window_bounds = array<i64: 1, 16, 128>}]} {
    %c0_i32 = arith.constant 0 : i32
    %0 = arith.cmpi eq, %arg1, %c0_i32 : i32
    %1 = arith.extui %0 : i1 to i32
    %c0_i32_0 = arith.constant 0 : i32
    %2 = arith.cmpi ne, %1, %c0_i32_0 : i32
    scf.if %2 {
      %cst_10 = arith.constant 0.000000e+00 : f32
      %16 = vector.broadcast %cst_10 : f32 to vector<1x16x128xf32>
      %c0_11 = arith.constant 0 : index
      %c0_12 = arith.constant 0 : index
      %c0_13 = arith.constant 0 : index
      %17 = vector.load %arg4[%c0_11, %c0_12, %c0_13] : memref<1x16x128xf32, #tpu.memory_space<vmem>>, vector<1x16x128xf32>
      tpu.vector_store %arg4[%c0_11, %c0_12, %c0_13], %16 {strides = array<i32>} : memref<1x16x128xf32, #tpu.memory_space<vmem>>, vector<1x16x128xf32>,
    } else {
    }
    %c0 = arith.constant 0 : index
    %c0_1 = arith.constant 0 : index
    %c0_2 = arith.constant 0 : index
    %3 = vector.load %arg4[%c0, %c0_1, %c0_2] : memref<1x16x128xf32, #tpu.memory_space<vmem>>, vector<1x16x128xf32>
    %4 = vector.shape_cast %3 : vector<1x16x128xf32> to vector<16x128xf32>
    %c0_3 = arith.constant 0 : index
    %c0_4 = arith.constant 0 : index
    %5 = vector.load %arg2[%c0_3, %c0_4] : memref<16x128xf32, #tpu.memory_space<vmem>>, vector<16x128xf32>
    %c0_5 = arith.constant 0 : index
    %c0_6 = arith.constant 0 : index
    %6 = vector.load %arg3[%c0_5, %c0_6] : memref<16x128xf32, #tpu.memory_space<vmem>>, vector<16x128xf32>
    %7 = arith.subf %5, %6 : vector<16x128xf32>
    %8 = arith.mulf %7, %7 : vector<16x128xf32>
    %cst = arith.constant 9.99999996E-13 : f32
    %9 = vector.broadcast %cst : f32 to vector<16x128xf32>
    %10 = arith.addf %8, %9 : vector<16x128xf32>
    %11 = math.sqrt %10 : vector<16x128xf32>
    %12 = arith.addf %4, %11 : vector<16x128xf32>
    %c0_7 = arith.constant 0 : index
    %c0_8 = arith.constant 0 : index
    %c0_9 = arith.constant 0 : index
    %13 = vector.load %arg4[%c0_7, %c0_8, %c0_9] : memref<1x16x128xf32, #tpu.memory_space<vmem>>, vector<1x16x128xf32>
    %14 = vector.shape_cast %13 : vector<1x16x128xf32> to vector<16x128xf32>
    %15 = vector.shape_cast %12 : vector<16x128xf32> to vector<1x16x128xf32>
    tpu.vector_store %arg4[%c0_7, %c0_8, %c0_9], %15 {strides = array<i32>} : memref<1x16x128xf32, #tpu.memory_space<vmem>>, vector<1x16x128xf32>,
    return
  }
  func.func @transform_0(%arg0: i32, %arg1: i32) -> (i32, i32) {
    %c1_i32 = arith.constant 1 : i32
    %0 = arith.muli %arg0, %c1_i32 : i32
    %1 = arith.addi %0, %arg1 : i32
    %c0_i32 = arith.constant 0 : i32
    %2 = arith.minsi %1, %c0_i32 : i32
    %c0_i32_0 = arith.constant 0 : i32
    %c0_i32_1 = arith.constant 0 : i32
    return %2, %c0_i32_0 : i32, i32
  }
  func.func @transform_1(%arg0: i32, %arg1: i32) -> (i32, i32) {
    %c1_i32 = arith.constant 1 : i32
    %0 = arith.muli %arg0, %c1_i32 : i32
    %1 = arith.addi %0, %arg1 : i32
    %c0_i32 = arith.constant 0 : i32
    %2 = arith.minsi %1, %c0_i32 : i32
    %c0_i32_0 = arith.constant 0 : i32
    %c0_i32_1 = arith.constant 0 : i32
    return %2, %c0_i32_0 : i32, i32
  }
  func.func @transform_2(%arg0: i32, %arg1: i32) -> (i32, i32, i32) {
    %c0_i32 = arith.constant 0 : i32
    %c0_i32_0 = arith.constant 0 : i32
    %c0_i32_1 = arith.constant 0 : i32
    return %arg0, %c0_i32, %c0_i32_0 : i32, i32, i32
  }
}

</mosaic_0001>

<llo_original>
// kernel: tpu_custom_call.1
$region0: #{tpu_custom_call.1}
  #allocation0 [shape = 'u32[]', space=smem, size = 0x4, offset = 0x4, fixed_abs, tag = 'smem constant byte address 0x4 - core index']
  #allocation1 [shape = 'u32[144,128]{1,0:T(1,128)}', space=vmem, size = 0x12000, scoped, tag = 'internal scratch']
  %s0 = inlined_call_operand.hbm [shape: f32[16,128], index: 0, kind: input, shape index: {}]
  %s1 = inlined_call_operand.hbm [shape: f32[16,128], index: 1, kind: input, shape index: {}]
  %s2 = inlined_call_operand.hbm [shape: f32[1,16,128], index: 2, kind: output, shape index: {}]
  %s3 = sld [smem:[#allocation0]]
  $region30: #{tpu_custom_call.1} parent=0
    _
  %s5 = ssub.s32 1, %s3
  %s6 = scalar_select 0, %s5, %s3
  $region1: #{tpu_custom_call.1} parent=0
    #allocation2 [shape = 'u8[8192]{0}', space=vmem, size = 0x2000, scoped, tag = 'input window, operand 0, single buffered']
    #allocation3 [shape = 's32[1]{0}', space=sflag, size = 0x4, scoped, tag = 'scoped memory for tpu_custom_call.1']
    #allocation4 [shape = 's32[1]{0}', space=sflag, size = 0x4, scoped, tag = 'scoped memory for tpu_custom_call.1']
    #allocation5 [shape = 'u8[8192]{0}', space=vmem, size = 0x2000, scoped, tag = 'input window, operand 1, single buffered']
    #allocation6 [shape = 's32[1]{0}', space=sflag, size = 0x4, scoped, tag = 'scoped memory for tpu_custom_call.1']
    #allocation7 [shape = 'u8[8192]{0}', space=vmem, size = 0x2000, scoped, tag = 'output window, operand 0, single buffered']
    %7 = vsyncpa [#allocation3], 0
    %8 = vsyncpa [#allocation6], 0
    %9 = vsyncpa [#allocation4], 0
    // Predicated region
    $region2: #{tpu_custom_call.1} parent=1 // pred_check
      _
    $region3: #{tpu_custom_call.1} parent=1 // pred_check_branch
      %11 = sbr.rel (0) target = $region5
    $region4: #{tpu_custom_call.1} parent=1 // pred_region
      %s12 = sadd.s32 0, 0
      %p13 = scmp.lt.s32.totalorder %s12, 0
      %s14 = scalar_select %p13, %s12, 0
      %s15 = smul.u32 2, %s14
      %s17 = ssub.s32 256, 256
      %18 = vsyncadd [#allocation3], %s17
      %s19 = smul.addr %s15, 128
      %s20 = scalar_lea.hbm %s0, %s19
      %s21 = sshll.u32 [#allocation2], 4
      %s22 = int_to_ptr.vmem [resolvable:$true] %s21
      %27 = dma.hbm_to_vmem [thread:$0]  %s20, 256, %s22, [#allocation3], 128, 128, 8
    $region5: #{tpu_custom_call.1} parent=1 // pred_fallthru
      _
    // Predicated region
    $region6: #{tpu_custom_call.1} parent=1 // pred_check
      _
    $region7: #{tpu_custom_call.1} parent=1 // pred_check_branch
      %29 = sbr.rel (0) target = $region9
    $region8: #{tpu_custom_call.1} parent=1 // pred_region
      %s30 = sadd.s32 0, 0
      %p31 = scmp.lt.s32.totalorder %s30, 0
      %s32 = scalar_select %p31, %s30, 0
      %s33 = smul.u32 2, %s32
      %s35 = ssub.s32 256, 256
      %36 = vsyncadd [#allocation6], %s35
      %s37 = smul.addr %s33, 128
      %s38 = scalar_lea.hbm %s1, %s37
      %s39 = sshll.u32 [#allocation5], 4
      %s40 = int_to_ptr.vmem [resolvable:$true] %s39
      %45 = dma.hbm_to_vmem [thread:$0]  %s38, 256, %s40, [#allocation6], 128, 128, 8
    $region9: #{tpu_custom_call.1} parent=1 // pred_fallthru
      _
    // Predicated region
    $region10: #{tpu_custom_call.1} parent=1 // pred_check
      _
    $region11: #{tpu_custom_call.1} parent=1 // pred_check_branch
      %47 = sbr.rel (0) target = $region13
    $region12: #{tpu_custom_call.1} parent=1 // pred_region
      %48 = dma.done [#allocation3], 256
    $region13: #{tpu_custom_call.1} parent=1 // pred_fallthru
      _
    // Predicated region
    $region14: #{tpu_custom_call.1} parent=1 // pred_check
      _
    $region15: #{tpu_custom_call.1} parent=1 // pred_check_branch
      %50 = sbr.rel (0) target = $region17
    $region16: #{tpu_custom_call.1} parent=1 // pred_region
      %51 = dma.done [#allocation6], 256
    $region17: #{tpu_custom_call.1} parent=1 // pred_fallthru
      _
    %s52 = sadd.s32 0, 0
    %p53 = scmp.lt.s32.totalorder %s52, 0
    %s54 = scalar_select %p53, %s52, 0
    %s55 = smul.u32 2, %s54
    %s56 = sadd.s32 0, 0
    %p57 = scmp.lt.s32.totalorder %s56, 0
    %s58 = scalar_select %p57, %s56, 0
    %s59 = smul.u32 2, %s58
    %p60 = scmp.eq.s32.totalorder 0, 0
    // Predicated region
    $region18: #{tpu_custom_call.1} parent=1 // pred_check
      %p61 = pneg %p60
    $region19: #{tpu_custom_call.1} parent=1 // pred_check_branch
      %63 = sbr.rel (%p61) target = $region21
    $region20: #{tpu_custom_call.1} parent=1 // pred_region
      %64 = vst [vmem:[#allocation7] sm:$0xff] 0.0
      %65 = vst [vmem:[#allocation7 + $0x8] sm:$0xff] 0.0
    $region21: #{tpu_custom_call.1} parent=1 // pred_fallthru
      _
    %v66 = vld [vmem:[#allocation7] sm:$0xff]
    %v67 = vld [vmem:[#allocation7 + $0x8] sm:$0xff]
    %v68 = vld [vmem:[#allocation2] sm:$0xff]
    %v69 = vld [vmem:[#allocation2 + $0x8] sm:$0xff]
    %v70 = vld [vmem:[#allocation5] sm:$0xff]
    %v71 = vld [vmem:[#allocation5 + $0x8] sm:$0xff]
    %v72 = vsub.f32 %v68, %v70
    %v73 = vsub.f32 %v69, %v71
    %v74 = vmul.f32 %v72, %v72
    %v75 = vmul.f32 %v73, %v73
    %v76 = vadd.f32 %v74, 1e-12
    %v77 = vadd.f32 %v75, 1e-12
    %v78 = vrsqrt.pop %v76
    %v79 = vmul.f32 %v76, %v78
    %vm80 = vcmp.eq.f32.partialorder %v76, inf
    %v81 = vsel %vm80, %v76, %v79
    %vm82 = vcmp.eq.f32.partialorder %v76, 0.0
    %v83 = vand.u32 %v76, 2147483648
    %v84 = vsel %vm82, %v83, %v81
    %v85 = vrsqrt.pop %v77
    %v86 = vmul.f32 %v77, %v85
    %vm87 = vcmp.eq.f32.partialorder %v77, inf
    %v88 = vsel %vm87, %v77, %v86
    %vm89 = vcmp.eq.f32.partialorder %v77, 0.0
    %v90 = vand.u32 %v77, 2147483648
    %v91 = vsel %vm89, %v90, %v88
    %v92 = vadd.f32 %v66, %v84
    %v93 = vadd.f32 %v67, %v91
    %94 = vst [vmem:[#allocation7] sm:$0xff] %v92
    %95 = vst [vmem:[#allocation7 + $0x8] sm:$0xff] %v93
    // Predicated region
    $region22: #{tpu_custom_call.1} parent=1 // pred_check
      _
    $region23: #{tpu_custom_call.1} parent=1 // pred_check_branch
      %97 = sbr.rel (0) target = $region25
    $region24: #{tpu_custom_call.1} parent=1 // pred_region
      %s99 = ssub.s32 256, 256
      %100 = vsyncadd [#allocation4], %s99
      %s101 = sshll.u32 [#allocation7], 4
      %s102 = int_to_ptr.vmem [resolvable:$true] %s101
      %107 = dma.vmem_to_hbm [thread:$0]  %s102, 256, %s2, [#allocation4], 128, 128, 8
    $region25: #{tpu_custom_call.1} parent=1 // pred_fallthru
      _
    // Predicated region
    $region26: #{tpu_custom_call.1} parent=1 // pred_check
      _
    $region27: #{tpu_custom_call.1} parent=1 // pred_check_branch
      %109 = sbr.rel (0) target = $region29
    $region28: #{tpu_custom_call.1} parent=1 // pred_region
      %110 = dma.done [#allocation4], 256
    $region29: #{tpu_custom_call.1} parent=1 // pred_fallthru
      _
    %111 = vsyncpa [#allocation3], 1
    %112 = vsyncpa [#allocation6], 1
    %113 = vsyncpa [#allocation4], 1

</llo_original>
